<compile_context>
chip_gen: v7x
topology: tpu7x:2x2x1
jax: 0.10.0
libtpu: 0.0.40
codegen_flags: <defaults>
</compile_context>

<pallas_src>
import functools

import jax
import jax.numpy as jnp
import numpy as np
from jax.experimental import pallas as pl
from jax.experimental.pallas import tpu as pltpu


def _cnn_dec_block_kernel(x_ref, w_ref, mask_ref, gamma_ref, beta_ref, o_ref,
                          *, H, W, negative_slope, eps):
    """Fused 3x3 conv (im2col, one MXU dot per image) + training-mode BN + LeakyReLU.

    x_ref:     (N, Cin, H*W)   NCHW activation, H*W collapsed onto the lane axis
    w_ref:     (Cout, 9*Cin)   conv weight, tap-major / channel-minor along K
    mask_ref:  (9, 1, H*W)     per-tap boundary masks (1.0 inside, 0.0 = zero pad)
    gamma_ref: (Cout, 1)       BN scale
    beta_ref:  (Cout, 1)       BN shift
    o_ref:     (N, Cout, H*W)  output, lane-dense (H*W is a multiple of 128)
    """
    N, Cin, HW = x_ref.shape
    Cout = o_ref.shape[1]

    wmat = w_ref[...]                    # (Cout, 9*Cin)
    masks = mask_ref[...]                # (9, 1, HW)

    # ---- Conv2d(3x3, padding=1): one im2col matmul per image -----------------
    convs = []
    for n in range(N):                   # static unroll over the small batch; dots stay 2-D
        xn = x_ref[n]                    # (Cin, HW)
        taps = []
        t = 0
        for oy in (-1, 0, 1):
            for ox in (-1, 0, 1):
                s = oy * W + ox          # flat lane shift for tap (oy, ox)
                if s == 0:
                    tap = xn             # center tap: no shift, mask is all-ones
                else:
                    shifted = pltpu.roll(xn, shift=(-s) % HW, axis=1)   # lane rotate (XLU)
                    tap = shifted * masks[t]                            # zero the padded border
                taps.append(tap)
                t += 1
        pn = jnp.concatenate(taps, axis=0)                    # (9*Cin, HW) im2col matrix
        convs.append(jnp.dot(wmat, pn,
                             preferred_element_type=jnp.float32))       # (Cout, HW)
    # NOTE: conv bias intentionally omitted -- it cancels exactly under training-mode BN.

    # ---- BatchNorm2d, training-mode batch statistics (single pass sum / sumsq) ----
    s1 = convs[0]
    s2 = convs[0] * convs[0]
    for n in range(1, N):
        s1 = s1 + convs[n]
        s2 = s2 + convs[n] * convs[n]
    inv_cnt = 1.0 / float(N * HW)
    mean = jnp.sum(s1, axis=1, keepdims=True) * inv_cnt       # (Cout, 1)
    ex2 = jnp.sum(s2, axis=1, keepdims=True) * inv_cnt
    var = ex2 - mean * mean                                   # biased variance
    inv_std = jax.lax.rsqrt(var + eps)                        # EUP
    scale = gamma_ref[...] * inv_std                          # (Cout, 1)
    shift = beta_ref[...] - mean * scale

    # ---- affine + LeakyReLU(0.02), lane-dense stores --------------------------
    for n in range(N):
        y = convs[n] * scale + shift                          # (Cout, HW)
        o_ref[n] = jnp.where(y > 0, y, negative_slope * y).astype(o_ref.dtype)


def _tap_masks(H, W):
    """(9, 1, H*W) f32 masks realizing the zero padding of a 3x3 / pad=1 conv (host constant)."""
    yy, xx = np.meshgrid(np.arange(H), np.arange(W), indexing="ij")
    rows = []
    for oy in (-1, 0, 1):
        for ox in (-1, 0, 1):
            ok = ((yy + oy >= 0) & (yy + oy < H) & (xx + ox >= 0) & (xx + ox < W))
            rows.append(ok.reshape(1, H * W).astype(np.float32))
    return jnp.asarray(np.stack(rows, axis=0))


def cnn_dec_block(x_nchw, w_oihw, bias, gamma, beta, *, negative_slope=0.02, eps=1e-5):
    """NCHW in, NCHW out (matches the PyTorch module).

    `bias` is accepted for API parity with nn.Conv2d but unused: training-mode
    BatchNorm cancels a per-channel conv bias exactly.
    """
    del bias
    N, Cin, H, W = x_nchw.shape
    Cout = w_oihw.shape[0]
    HW = H * W

    # Free reshapes only -- no transposes, no jnp.pad, no extra HBM round trips.
    x_flat = x_nchw.reshape(N, Cin, HW).astype(jnp.float32)
    # (Cout, Cin, 3, 3) -> (Cout, 3, 3, Cin) -> (Cout, 9*Cin): tap-major / channel-minor,
    # matching the im2col row order built in the kernel (tiny parameter tensor).
    w_mat = jnp.transpose(w_oihw, (0, 2, 3, 1)).reshape(Cout, 9 * Cin).astype(jnp.float32)

    kernel = functools.partial(_cnn_dec_block_kernel, H=H, W=W,
                               negative_slope=negative_slope, eps=eps)

    # TODO(synk): for non-toy N/H/W (esp. v7x's 64 MiB VMEM) add a grid over N/H with
    # BlockSpecs, scratch-accumulated BN sums + a finalize pass, and
    # dimension_semantics=("parallel", ...) to use both v7x TensorCores.
    out_flat = pl.pallas_call(
        kernel,
        out_shape=jax.ShapeDtypeStruct((N, Cout, HW), jnp.float32),
        in_specs=[pl.BlockSpec(memory_space=pltpu.MemorySpace.VMEM)] * 5,
        out_specs=pl.BlockSpec(memory_space=pltpu.MemorySpace.VMEM),
        compiler_params=pltpu.CompilerParams(vmem_limit_bytes=32 * 1024 * 1024),
    )(x_flat, w_mat, _tap_masks(H, W),
      gamma.reshape(Cout, 1).astype(jnp.float32),
      beta.reshape(Cout, 1).astype(jnp.float32))

    return out_flat.reshape(N, Cout, H, W)   # free reshape back to NCHW


def reference(x_nchw, w_oihw, bias, gamma, beta):
    """Pure-JAX reference of the PyTorch forward (training-mode BN, includes the conv bias)."""
    y = jax.lax.conv_general_dilated(
        x_nchw.astype(jnp.float32), w_oihw.astype(jnp.float32),
        window_strides=(1, 1), padding=((1, 1), (1, 1)),
        dimension_numbers=("NCHW", "OIHW", "NCHW"))
    y = y + bias.reshape(1, -1, 1, 1)
    mean = jnp.mean(y, axis=(0, 2, 3), keepdims=True)
    var = jnp.mean((y - mean) ** 2, axis=(0, 2, 3), keepdims=True)
    yn = (y - mean) / jnp.sqrt(var + 1e-5)
    yn = yn * gamma.reshape(1, -1, 1, 1) + beta.reshape(1, -1, 1, 1)
    return jnp.where(yn > 0, yn, 0.02 * yn)


if __name__ == "__main__":
    # Small shapes consistent with the module: batch=2, in_chans=4, out_chans=8, 16x16 spatial.
    N, Cin, Cout, H, W = 2, 4, 8, 16, 16

    key = jax.random.PRNGKey(0)
    kx, kw, kb, kg, kbe = jax.random.split(key, 5)

    x = jax.random.normal(kx, (N, Cin, H, W), dtype=jnp.float32)
    w = jax.random.normal(kw, (Cout, Cin, 3, 3), dtype=jnp.float32) * 0.1
    b = jax.random.normal(kb, (Cout,), dtype=jnp.float32) * 0.1
    gamma = 1.0 + 0.1 * jax.random.normal(kg, (Cout,), dtype=jnp.float32)
    beta = 0.1 * jax.random.normal(kbe, (Cout,), dtype=jnp.float32)

    out = jax.block_until_ready(cnn_dec_block(x, w, b, gamma, beta))
    ref = jax.block_until_ready(reference(x, w, b, gamma, beta))

    assert out.shape == (N, Cout, H, W)
    assert jnp.allclose(out, ref, atol=2e-4, rtol=2e-4), "mismatch vs JAX reference"

    print("KERNEL_OK")
</pallas_src>

<mosaic_0001>
module attributes {stable_mosaic.version = 11 : i64} {
  func.func @_cnn_dec_block_kernel(%arg0: memref<2x4x256xf32, #tpu.memory_space<vmem>>, %arg1: memref<8x36xf32, #tpu.memory_space<vmem>>, %arg2: memref<9x1x256xf32, #tpu.memory_space<vmem>>, %arg3: memref<8x1xf32, #tpu.memory_space<vmem>>, %arg4: memref<8x1xf32, #tpu.memory_space<vmem>>, %arg5: memref<2x8x256xf32, #tpu.memory_space<vmem>>) attributes {dimension_semantics = [], scalar_prefetch = 0 : i64, scratch_operands = 0 : i64, tpu.core_type = #tpu.core_type<tc>} {
    %c0 = arith.constant 0 : index
    %c0_0 = arith.constant 0 : index
    %0 = vector.load %arg1[%c0, %c0_0] : memref<8x36xf32, #tpu.memory_space<vmem>>, vector<8x36xf32>
    %c0_1 = arith.constant 0 : index
    %c0_2 = arith.constant 0 : index
    %c0_3 = arith.constant 0 : index
    %1 = vector.load %arg2[%c0_1, %c0_2, %c0_3] : memref<9x1x256xf32, #tpu.memory_space<vmem>>, vector<9x1x256xf32>
    %c0_4 = arith.constant 0 : index
    %c0_5 = arith.constant 0 : index
    %c0_6 = arith.constant 0 : index
    %2 = vector.load %arg0[%c0_4, %c0_5, %c0_6] : memref<2x4x256xf32, #tpu.memory_space<vmem>>, vector<1x4x256xf32>
    %3 = vector.shape_cast %2 : vector<1x4x256xf32> to vector<4x256xf32>
    %c17_i32 = arith.constant 17 : i32
    %4 = tpu.dynamic_rotate %3 by %c17_i32 dim 1 : vector<4x256xf32>, i32 -> vector<4x256xf32>
    %5 = vector.extract_strided_slice %1 {offsets = [0, 0, 0], sizes = [1, 1, 256], strides = [1, 1, 1]} : vector<9x1x256xf32> to vector<1x1x256xf32>
    %6 = vector.shape_cast %5 : vector<1x1x256xf32> to vector<1x256xf32>
    %7 = vector.broadcast %6 : vector<1x256xf32> to vector<4x256xf32>
    %8 = arith.mulf %4, %7 : vector<4x256xf32>
    %c16_i32 = arith.constant 16 : i32
    %9 = tpu.dynamic_rotate %3 by %c16_i32 dim 1 : vector<4x256xf32>, i32 -> vector<4x256xf32>
    %10 = vector.extract_strided_slice %1 {offsets = [1, 0, 0], sizes = [1, 1, 256], strides = [1, 1, 1]} : vector<9x1x256xf32> to vector<1x1x256xf32>
    %11 = vector.shape_cast %10 : vector<1x1x256xf32> to vector<1x256xf32>
    %12 = vector.broadcast %11 : vector<1x256xf32> to vector<4x256xf32>
    %13 = arith.mulf %9, %12 : vector<4x256xf32>
    %c15_i32 = arith.constant 15 : i32
    %14 = tpu.dynamic_rotate %3 by %c15_i32 dim 1 : vector<4x256xf32>, i32 -> vector<4x256xf32>
    %15 = vector.extract_strided_slice %1 {offsets = [2, 0, 0], sizes = [1, 1, 256], strides = [1, 1, 1]} : vector<9x1x256xf32> to vector<1x1x256xf32>
    %16 = vector.shape_cast %15 : vector<1x1x256xf32> to vector<1x256xf32>
    %17 = vector.broadcast %16 : vector<1x256xf32> to vector<4x256xf32>
    %18 = arith.mulf %14, %17 : vector<4x256xf32>
    %c1_i32 = arith.constant 1 : i32
    %19 = tpu.dynamic_rotate %3 by %c1_i32 dim 1 : vector<4x256xf32>, i32 -> vector<4x256xf32>
    %20 = vector.extract_strided_slice %1 {offsets = [3, 0, 0], sizes = [1, 1, 256], strides = [1, 1, 1]} : vector<9x1x256xf32> to vector<1x1x256xf32>
    %21 = vector.shape_cast %20 : vector<1x1x256xf32> to vector<1x256xf32>
    %22 = vector.broadcast %21 : vector<1x256xf32> to vector<4x256xf32>
    %23 = arith.mulf %19, %22 : vector<4x256xf32>
    %c255_i32 = arith.constant 255 : i32
    %24 = tpu.dynamic_rotate %3 by %c255_i32 dim 1 : vector<4x256xf32>, i32 -> vector<4x256xf32>
    %25 = vector.extract_strided_slice %1 {offsets = [5, 0, 0], sizes = [1, 1, 256], strides = [1, 1, 1]} : vector<9x1x256xf32> to vector<1x1x256xf32>
    %26 = vector.shape_cast %25 : vector<1x1x256xf32> to vector<1x256xf32>
    %27 = vector.broadcast %26 : vector<1x256xf32> to vector<4x256xf32>
    %28 = arith.mulf %24, %27 : vector<4x256xf32>
    %c241_i32 = arith.constant 241 : i32
    %29 = tpu.dynamic_rotate %3 by %c241_i32 dim 1 : vector<4x256xf32>, i32 -> vector<4x256xf32>
    %30 = vector.extract_strided_slice %1 {offsets = [6, 0, 0], sizes = [1, 1, 256], strides = [1, 1, 1]} : vector<9x1x256xf32> to vector<1x1x256xf32>
    %31 = vector.shape_cast %30 : vector<1x1x256xf32> to vector<1x256xf32>
    %32 = vector.broadcast %31 : vector<1x256xf32> to vector<4x256xf32>
    %33 = arith.mulf %29, %32 : vector<4x256xf32>
    %c240_i32 = arith.constant 240 : i32
    %34 = tpu.dynamic_rotate %3 by %c240_i32 dim 1 : vector<4x256xf32>, i32 -> vector<4x256xf32>
    %35 = vector.extract_strided_slice %1 {offsets = [7, 0, 0], sizes = [1, 1, 256], strides = [1, 1, 1]} : vector<9x1x256xf32> to vector<1x1x256xf32>
    %36 = vector.shape_cast %35 : vector<1x1x256xf32> to vector<1x256xf32>
    %37 = vector.broadcast %36 : vector<1x256xf32> to vector<4x256xf32>
    %38 = arith.mulf %34, %37 : vector<4x256xf32>
    %c239_i32 = arith.constant 239 : i32
    %39 = tpu.dynamic_rotate %3 by %c239_i32 dim 1 : vector<4x256xf32>, i32 -> vector<4x256xf32>
    %40 = vector.extract_strided_slice %1 {offsets = [8, 0, 0], sizes = [1, 1, 256], strides = [1, 1, 1]} : vector<9x1x256xf32> to vector<1x1x256xf32>
    %41 = vector.shape_cast %40 : vector<1x1x256xf32> to vector<1x256xf32>
    %42 = vector.broadcast %41 : vector<1x256xf32> to vector<4x256xf32>
    %43 = arith.mulf %39, %42 : vector<4x256xf32>
    %44 = tpu.concatenate %8, %13, %18, %23, %3, %28, %33, %38, %43 in 0 : vector<4x256xf32>, vector<4x256xf32>, vector<4x256xf32>, vector<4x256xf32>, vector<4x256xf32>, vector<4x256xf32>, vector<4x256xf32>, vector<4x256xf32>, vector<4x256xf32> -> vector<36x256xf32>
    %cst = arith.constant dense<0.000000e+00> : vector<8x256xf32>
    %45 = tpu.matmul %0, %44, %cst {dimension_numbers = #tpu.dot_dimension_numbers<[1], [0], [0], [1], [0, 0, 1, 1], [], []>} : vector<8x36xf32>, vector<36x256xf32>, vector<8x256xf32> -> vector<8x256xf32>
    %c1 = arith.constant 1 : index
    %c0_7 = arith.constant 0 : index
    %c0_8 = arith.constant 0 : index
    %46 = vector.load %arg0[%c1, %c0_7, %c0_8] : memref<2x4x256xf32, #tpu.memory_space<vmem>>, vector<1x4x256xf32>
    %47 = vector.shape_cast %46 : vector<1x4x256xf32> to vector<4x256xf32>
    %c17_i32_9 = arith.constant 17 : i32
    %48 = tpu.dynamic_rotate %47 by %c17_i32_9 dim 1 : vector<4x256xf32>, i32 -> vector<4x256xf32>
    %49 = vector.extract_strided_slice %1 {offsets = [0, 0, 0], sizes = [1, 1, 256], strides = [1, 1, 1]} : vector<9x1x256xf32> to vector<1x1x256xf32>
    %50 = vector.shape_cast %49 : vector<1x1x256xf32> to vector<1x256xf32>
    %51 = vector.broadcast %50 : vector<1x256xf32> to vector<4x256xf32>
    %52 = arith.mulf %48, %51 : vector<4x256xf32>
    %c16_i32_10 = arith.constant 16 : i32
    %53 = tpu.dynamic_rotate %47 by %c16_i32_10 dim 1 : vector<4x256xf32>, i32 -> vector<4x256xf32>
    %54 = vector.extract_strided_slice %1 {offsets = [1, 0, 0], sizes = [1, 1, 256], strides = [1, 1, 1]} : vector<9x1x256xf32> to vector<1x1x256xf32>
    %55 = vector.shape_cast %54 : vector<1x1x256xf32> to vector<1x256xf32>
    %56 = vector.broadcast %55 : vector<1x256xf32> to vector<4x256xf32>
    %57 = arith.mulf %53, %56 : vector<4x256xf32>
    %c15_i32_11 = arith.constant 15 : i32
    %58 = tpu.dynamic_rotate %47 by %c15_i32_11 dim 1 : vector<4x256xf32>, i32 -> vector<4x256xf32>
    %59 = vector.extract_strided_slice %1 {offsets = [2, 0, 0], sizes = [1, 1, 256], strides = [1, 1, 1]} : vector<9x1x256xf32> to vector<1x1x256xf32>
    %60 = vector.shape_cast %59 : vector<1x1x256xf32> to vector<1x256xf32>
    %61 = vector.broadcast %60 : vector<1x256xf32> to vector<4x256xf32>
    %62 = arith.mulf %58, %61 : vector<4x256xf32>
    %c1_i32_12 = arith.constant 1 : i32
    %63 = tpu.dynamic_rotate %47 by %c1_i32_12 dim 1 : vector<4x256xf32>, i32 -> vector<4x256xf32>
    %64 = vector.extract_strided_slice %1 {offsets = [3, 0, 0], sizes = [1, 1, 256], strides = [1, 1, 1]} : vector<9x1x256xf32> to vector<1x1x256xf32>
    %65 = vector.shape_cast %64 : vector<1x1x256xf32> to vector<1x256xf32>
    %66 = vector.broadcast %65 : vector<1x256xf32> to vector<4x256xf32>
    %67 = arith.mulf %63, %66 : vector<4x256xf32>
    %c255_i32_13 = arith.constant 255 : i32
    %68 = tpu.dynamic_rotate %47 by %c255_i32_13 dim 1 : vector<4x256xf32>, i32 -> vector<4x256xf32>
    %69 = vector.extract_strided_slice %1 {offsets = [5, 0, 0], sizes = [1, 1, 256], strides = [1, 1, 1]} : vector<9x1x256xf32> to vector<1x1x256xf32>
    %70 = vector.shape_cast %69 : vector<1x1x256xf32> to vector<1x256xf32>
    %71 = vector.broadcast %70 : vector<1x256xf32> to vector<4x256xf32>
    %72 = arith.mulf %68, %71 : vector<4x256xf32>
    %c241_i32_14 = arith.constant 241 : i32
    %73 = tpu.dynamic_rotate %47 by %c241_i32_14 dim 1 : vector<4x256xf32>, i32 -> vector<4x256xf32>
    %74 = vector.extract_strided_slice %1 {offsets = [6, 0, 0], sizes = [1, 1, 256], strides = [1, 1, 1]} : vector<9x1x256xf32> to vector<1x1x256xf32>
    %75 = vector.shape_cast %74 : vector<1x1x256xf32> to vector<1x256xf32>
    %76 = vector.broadcast %75 : vector<1x256xf32> to vector<4x256xf32>
    %77 = arith.mulf %73, %76 : vector<4x256xf32>
    %c240_i32_15 = arith.constant 240 : i32
    %78 = tpu.dynamic_rotate %47 by %c240_i32_15 dim 1 : vector<4x256xf32>, i32 -> vector<4x256xf32>
    %79 = vector.extract_strided_slice %1 {offsets = [7, 0, 0], sizes = [1, 1, 256], strides = [1, 1, 1]} : vector<9x1x256xf32> to vector<1x1x256xf32>
    %80 = vector.shape_cast %79 : vector<1x1x256xf32> to vector<1x256xf32>
    %81 = vector.broadcast %80 : vector<1x256xf32> to vector<4x256xf32>
    %82 = arith.mulf %78, %81 : vector<4x256xf32>
    %c239_i32_16 = arith.constant 239 : i32
    %83 = tpu.dynamic_rotate %47 by %c239_i32_16 dim 1 : vector<4x256xf32>, i32 -> vector<4x256xf32>
    %84 = vector.extract_strided_slice %1 {offsets = [8, 0, 0], sizes = [1, 1, 256], strides = [1, 1, 1]} : vector<9x1x256xf32> to vector<1x1x256xf32>
    %85 = vector.shape_cast %84 : vector<1x1x256xf32> to vector<1x256xf32>
    %86 = vector.broadcast %85 : vector<1x256xf32> to vector<4x256xf32>
    %87 = arith.mulf %83, %86 : vector<4x256xf32>
    %88 = tpu.concatenate %52, %57, %62, %67, %47, %72, %77, %82, %87 in 0 : vector<4x256xf32>, vector<4x256xf32>, vector<4x256xf32>, vector<4x256xf32>, vector<4x256xf32>, vector<4x256xf32>, vector<4x256xf32>, vector<4x256xf32>, vector<4x256xf32> -> vector<36x256xf32>
    %cst_17 = arith.constant dense<0.000000e+00> : vector<8x256xf32>
    %89 = tpu.matmul %0, %88, %cst_17 {dimension_numbers = #tpu.dot_dimension_numbers<[1], [0], [0], [1], [0, 0, 1, 1], [], []>} : vector<8x36xf32>, vector<36x256xf32>, vector<8x256xf32> -> vector<8x256xf32>
    %90 = arith.mulf %45, %45 : vector<8x256xf32>
    %91 = arith.addf %45, %89 : vector<8x256xf32>
    %92 = arith.mulf %89, %89 : vector<8x256xf32>
    %93 = arith.addf %90, %92 : vector<8x256xf32>
    %cst_18 = arith.constant dense<0.000000e+00> : vector<8xf32>
    %94 = vector.multi_reduction <add>, %91, %cst_18 [1] : vector<8x256xf32> to vector<8xf32>
    %95 = vector.shape_cast %94 : vector<8xf32> to vector<8x1xf32>
    %cst_19 = arith.constant 0.001953125 : f32
    %96 = vector.broadcast %cst_19 : f32 to vector<8x1xf32>
    %97 = arith.mulf %95, %96 : vector<8x1xf32>
    %cst_20 = arith.constant dense<0.000000e+00> : vector<8xf32>
    %98 = vector.multi_reduction <add>, %93, %cst_20 [1] : vector<8x256xf32> to vector<8xf32>
    %99 = vector.shape_cast %98 : vector<8xf32> to vector<8x1xf32>
    %cst_21 = arith.constant 0.001953125 : f32
    %100 = vector.broadcast %cst_21 : f32 to vector<8x1xf32>
    %101 = arith.mulf %99, %100 : vector<8x1xf32>
    %102 = arith.mulf %97, %97 : vector<8x1xf32>
    %103 = arith.subf %101, %102 : vector<8x1xf32>
    %cst_22 = arith.constant 9.99999974E-6 : f32
    %104 = vector.broadcast %cst_22 : f32 to vector<8x1xf32>
    %105 = arith.addf %103, %104 : vector<8x1xf32>
    %106 = math.rsqrt %105 : vector<8x1xf32>
    %c0_23 = arith.constant 0 : index
    %c0_24 = arith.constant 0 : index
    %107 = vector.load %arg3[%c0_23, %c0_24] : memref<8x1xf32, #tpu.memory_space<vmem>>, vector<8x1xf32>
    %108 = arith.mulf %107, %106 : vector<8x1xf32>
    %c0_25 = arith.constant 0 : index
    %c0_26 = arith.constant 0 : index
    %109 = vector.load %arg4[%c0_25, %c0_26] : memref<8x1xf32, #tpu.memory_space<vmem>>, vector<8x1xf32>
    %110 = arith.mulf %97, %108 : vector<8x1xf32>
    %111 = arith.subf %109, %110 : vector<8x1xf32>
    %112 = vector.broadcast %108 : vector<8x1xf32> to vector<8x256xf32>
    %113 = arith.mulf %45, %112 : vector<8x256xf32>
    %114 = vector.broadcast %111 : vector<8x1xf32> to vector<8x256xf32>
    %115 = arith.addf %113, %114 : vector<8x256xf32>
    %cst_27 = arith.constant 0.000000e+00 : f32
    %116 = vector.broadcast %cst_27 : f32 to vector<8x256xf32>
    %117 = arith.cmpf ogt, %115, %116 : vector<8x256xf32>
    %cst_28 = arith.constant 2.000000e-02 : f32
    %118 = vector.broadcast %cst_28 : f32 to vector<8x256xf32>
    %119 = arith.mulf %118, %115 : vector<8x256xf32>
    %120 = arith.select %117, %115, %119 : vector<8x256xi1>, vector<8x256xf32>
    %c0_29 = arith.constant 0 : index
    %c0_30 = arith.constant 0 : index
    %c0_31 = arith.constant 0 : index
    %121 = vector.load %arg5[%c0_29, %c0_30, %c0_31] : memref<2x8x256xf32, #tpu.memory_space<vmem>>, vector<1x8x256xf32>
    %122 = vector.shape_cast %121 : vector<1x8x256xf32> to vector<8x256xf32>
    %123 = vector.shape_cast %120 : vector<8x256xf32> to vector<1x8x256xf32>
    tpu.vector_store %arg5[%c0_29, %c0_30, %c0_31], %123 {strides = array<i32>} : memref<2x8x256xf32, #tpu.memory_space<vmem>>, vector<1x8x256xf32>,
    %124 = vector.broadcast %108 : vector<8x1xf32> to vector<8x256xf32>
    %125 = arith.mulf %89, %124 : vector<8x256xf32>
    %126 = vector.broadcast %111 : vector<8x1xf32> to vector<8x256xf32>
    %127 = arith.addf %125, %126 : vector<8x256xf32>
    %cst_32 = arith.constant 0.000000e+00 : f32
    %128 = vector.broadcast %cst_32 : f32 to vector<8x256xf32>
    %129 = arith.cmpf ogt, %127, %128 : vector<8x256xf32>
    %cst_33 = arith.constant 2.000000e-02 : f32
    %130 = vector.broadcast %cst_33 : f32 to vector<8x256xf32>
    %131 = arith.mulf %130, %127 : vector<8x256xf32>
    %132 = arith.select %129, %127, %131 : vector<8x256xi1>, vector<8x256xf32>
    %c1_34 = arith.constant 1 : index
    %c0_35 = arith.constant 0 : index
    %c0_36 = arith.constant 0 : index
    %133 = vector.load %arg5[%c1_34, %c0_35, %c0_36] : memref<2x8x256xf32, #tpu.memory_space<vmem>>, vector<1x8x256xf32>
    %134 = vector.shape_cast %133 : vector<1x8x256xf32> to vector<8x256xf32>
    %135 = vector.shape_cast %132 : vector<8x256xf32> to vector<1x8x256xf32>
    tpu.vector_store %arg5[%c1_34, %c0_35, %c0_36], %135 {strides = array<i32>} : memref<2x8x256xf32, #tpu.memory_space<vmem>>, vector<1x8x256xf32>,
    return
  }
}

</mosaic_0001>

<llo_original>
// kernel: tpu_custom_call.1
$region0: #{tpu_custom_call.1}
  #allocation0 [shape = 'u32[]', space=smem, size = 0x4, offset = 0x4, fixed_abs, tag = 'smem constant byte address 0x4 - core index']
  #allocation1 [shape = 'u32[144,128]{1,0:T(1,128)}', space=vmem, size = 0x12000, scoped, tag = 'internal scratch']
  %s0 = inlined_call_operand.hbm [shape: f32[2,4,256], index: 0, kind: input, shape index: {}]
  %s1 = inlined_call_operand.hbm [shape: f32[8,36], index: 1, kind: input, shape index: {}]
  %s2 = inlined_call_operand.vmem [shape: f32[9,1,256], index: 2, kind: input, shape index: {}]
  %s3 = inlined_call_operand.vmem [shape: f32[8,1], index: 3, kind: input, shape index: {}]
  %s4 = inlined_call_operand.vmem [shape: f32[8,1], index: 4, kind: input, shape index: {}]
  %s5 = inlined_call_operand.hbm [shape: f32[2,8,256], index: 5, kind: output, shape index: {}]
  %s6 = sld [smem:[#allocation0]]
  $region38: #{tpu_custom_call.1} parent=0
    _
  %s8 = ssub.s32 1, %s6
  %s9 = scalar_select 0, %s8, %s6
  $region1: #{tpu_custom_call.1} parent=0
    #allocation2 [shape = 'u8[8192]{0}', space=vmem, size = 0x2000, scoped, tag = 'input window, operand 0, single buffered']
    #allocation3 [shape = 's32[1]{0}', space=sflag, size = 0x4, scoped, tag = 'scoped memory for tpu_custom_call.1']
    #allocation4 [shape = 's32[1]{0}', space=sflag, size = 0x4, scoped, tag = 'scoped memory for tpu_custom_call.1']
    #allocation5 [shape = 'u8[4096]{0}', space=vmem, size = 0x1000, scoped, tag = 'input window, operand 1, single buffered']
    #allocation6 [shape = 's32[1]{0}', space=sflag, size = 0x4, scoped, tag = 'scoped memory for tpu_custom_call.1']
    #allocation7 [shape = 'u8[16384]{0}', space=vmem, size = 0x4000, scoped, tag = 'output window, operand 0, single buffered']
    %10 = vsyncpa [#allocation3], 0
    %11 = vsyncpa [#allocation6], 0
    %12 = vsyncpa [#allocation4], 0
    // Predicated region
    $region2: #{tpu_custom_call.1} parent=1 // pred_check
      _
    $region3: #{tpu_custom_call.1} parent=1 // pred_check_branch
      %14 = sbr.rel (0) target = $region5
    $region4: #{tpu_custom_call.1} parent=1 // pred_region
      %s16 = ssub.s32 256, 256
      %17 = vsyncadd [#allocation3], %s16
      %s18 = sshll.u32 [#allocation2], 4
      %s19 = int_to_ptr.vmem [resolvable:$true] %s18
      %24 = dma.hbm_to_vmem [thread:$0]  %s0, 256, %s19, [#allocation3], 128, 128, 8
    $region5: #{tpu_custom_call.1} parent=1 // pred_fallthru
      _
    // Predicated region
    $region6: #{tpu_custom_call.1} parent=1 // pred_check
      _
    $region7: #{tpu_custom_call.1} parent=1 // pred_check_branch
      %26 = sbr.rel (0) target = $region9
    $region8: #{tpu_custom_call.1} parent=1 // pred_region
      %s28 = ssub.s32 128, 128
      %29 = vsyncadd [#allocation6], %s28
      %s31 = sshll.u32 [#allocation5], 4
      %s32 = int_to_ptr.vmem [resolvable:$true] %s31
      %34 = dma.hbm_to_vmem [thread:$0]  %s1, 128, %s32, [#allocation6]
    $region9: #{tpu_custom_call.1} parent=1 // pred_fallthru
      _
    // Predicated region
    $region10: #{tpu_custom_call.1} parent=1 // pred_check
      _
    $region11: #{tpu_custom_call.1} parent=1 // pred_check_branch
      %36 = sbr.rel (0) target = $region13
    $region12: #{tpu_custom_call.1} parent=1 // pred_region
      _
    $region13: #{tpu_custom_call.1} parent=1 // pred_fallthru
      _
    // Predicated region
    $region14: #{tpu_custom_call.1} parent=1 // pred_check
      _
    $region15: #{tpu_custom_call.1} parent=1 // pred_check_branch
      %38 = sbr.rel (0) target = $region17
    $region16: #{tpu_custom_call.1} parent=1 // pred_region
      _
    $region17: #{tpu_custom_call.1} parent=1 // pred_fallthru
      _
    // Predicated region
    $region18: #{tpu_custom_call.1} parent=1 // pred_check
      _
    $region19: #{tpu_custom_call.1} parent=1 // pred_check_branch
      %40 = sbr.rel (0) target = $region21
    $region20: #{tpu_custom_call.1} parent=1 // pred_region
      _
    $region21: #{tpu_custom_call.1} parent=1 // pred_fallthru
      _
    // Predicated region
    $region22: #{tpu_custom_call.1} parent=1 // pred_check
      _
    $region23: #{tpu_custom_call.1} parent=1 // pred_check_branch
      %42 = sbr.rel (0) target = $region25
    $region24: #{tpu_custom_call.1} parent=1 // pred_region
      %43 = dma.done [#allocation3], 256
    $region25: #{tpu_custom_call.1} parent=1 // pred_fallthru
      _
    // Predicated region
    $region26: #{tpu_custom_call.1} parent=1 // pred_check
      _
    $region27: #{tpu_custom_call.1} parent=1 // pred_check_branch
      %45 = sbr.rel (0) target = $region29
    $region28: #{tpu_custom_call.1} parent=1 // pred_region
      %46 = dma.done [#allocation6], 128
    $region29: #{tpu_custom_call.1} parent=1 // pred_fallthru
      _
    %v47 = vld [vmem:[#allocation5] sm:$0xff]
    %v48 = vld [vmem:[%s2] sm:$0x3]
    %v49 = vld [vmem:[%s2 + $0x2] sm:$0x3]
    %v50 = vld [vmem:[%s2 + $0x4] sm:$0x3]
    %v51 = vld [vmem:[%s2 + $0x6] sm:$0x3]
    %v52 = vld [vmem:[%s2 + $0xa] sm:$0x3]
    %v53 = vld [vmem:[%s2 + $0xc] sm:$0x3]
    %v54 = vld [vmem:[%s2 + $0xe] sm:$0x3]
    %v55 = vld [vmem:[%s2 + $0x10] sm:$0x3]
    %v56 = vld [vmem:[#allocation2] sm:$0xff]
    %v58 = vcombine.high %v56, %v56
    %60 = vrot.lane.b32.xlu0 %v56, 17
    %v61 = vpop.permute.xlu0 %60
    %62 = vrot.lane.b32.xlu0 %v58, 17
    %v63 = vpop.permute.xlu0 %62
    %v64 = vlaneseq
    %v65 = vand.u32 %v64, 127
    %vm66 = vcmp.lt.s32.totalorder %v65, 17
    %v67 = vsel %vm66, %v61, %v63
    %v68 = vsel %vm66, %v63, %v61
    %v70 = vlaneseq
    %v71 = vshrl.u32 %v70, 7
    %v72 = vsub.s32 0, %v71
    %v73 = vrot.slane %v48, %v72
    %v74 = vlaneseq
    %v75 = vshrl.u32 %v74, 7
    %v76 = vsub.s32 1, %v75
    %v77 = vrot.slane %v48, %v76
    %v80 = vmul.f32 %v68, %v73
    %v81 = vmul.f32 %v67, %v77
    %82 = vrot.lane.b32.xlu0 %v56, 16
    %v83 = vpop.permute.xlu0 %82
    %84 = vrot.lane.b32.xlu0 %v58, 16
    %v85 = vpop.permute.xlu0 %84
    %vm86 = vcmp.lt.s32.totalorder %v65, 16
    %v87 = vsel %vm86, %v83, %v85
    %v88 = vsel %vm86, %v85, %v83
    %v90 = vlaneseq
    %v91 = vshrl.u32 %v90, 7
    %v92 = vsub.s32 0, %v91
    %v93 = vrot.slane %v49, %v92
    %v94 = vlaneseq
    %v95 = vshrl.u32 %v94, 7
    %v96 = vsub.s32 1, %v95
    %v97 = vrot.slane %v49, %v96
    %v100 = vmul.f32 %v88, %v93
    %v101 = vmul.f32 %v87, %v97
    %102 = vrot.lane.b32.xlu0 %v56, 15
    %v103 = vpop.permute.xlu0 %102
    %104 = vrot.lane.b32.xlu0 %v58, 15
    %v105 = vpop.permute.xlu0 %104
    %vm106 = vcmp.lt.s32.totalorder %v65, 15
    %v107 = vsel %vm106, %v103, %v105
    %v108 = vsel %vm106, %v105, %v103
    %v110 = vlaneseq
    %v111 = vshrl.u32 %v110, 7
    %v112 = vsub.s32 0, %v111
    %v113 = vrot.slane %v50, %v112
    %v114 = vlaneseq
    %v115 = vshrl.u32 %v114, 7
    %v116 = vsub.s32 1, %v115
    %v117 = vrot.slane %v50, %v116
    %v120 = vmul.f32 %v108, %v113
    %v121 = vmul.f32 %v107, %v117
    %122 = vrot.lane.b32.xlu0 %v56, 1
    %v123 = vpop.permute.xlu0 %122
    %124 = vrot.lane.b32.xlu0 %v58, 1
    %v125 = vpop.permute.xlu0 %124
    %vm126 = vcmp.lt.s32.totalorder %v65, 1
    %v127 = vsel %vm126, %v123, %v125
    %v128 = vsel %vm126, %v125, %v123
    %v130 = vlaneseq
    %v131 = vshrl.u32 %v130, 7
    %v132 = vsub.s32 0, %v131
    %v133 = vrot.slane %v51, %v132
    %v134 = vlaneseq
    %v135 = vshrl.u32 %v134, 7
    %v136 = vsub.s32 1, %v135
    %v137 = vrot.slane %v51, %v136
    %v140 = vmul.f32 %v128, %v133
    %v141 = vmul.f32 %v127, %v137
    %142 = vrot.lane.b32.xlu0 %v56, 127
    %v143 = vpop.permute.xlu0 %142
    %144 = vrot.lane.b32.xlu0 %v58, 127
    %v145 = vpop.permute.xlu0 %144
    %vm146 = vcmp.lt.s32.totalorder %v65, 127
    %v147 = vsel %vm146, %v143, %v145
    %v148 = vsel %vm146, %v145, %v143
    %v150 = vlaneseq
    %v151 = vshrl.u32 %v150, 7
    %v152 = vsub.s32 0, %v151
    %v153 = vrot.slane %v52, %v152
    %v154 = vlaneseq
    %v155 = vshrl.u32 %v154, 7
    %v156 = vsub.s32 1, %v155
    %v157 = vrot.slane %v52, %v156
    %v160 = vmul.f32 %v147, %v153
    %v161 = vmul.f32 %v148, %v157
    %162 = vrot.lane.b32.xlu0 %v56, 113
    %v163 = vpop.permute.xlu0 %162
    %164 = vrot.lane.b32.xlu0 %v58, 113
    %v165 = vpop.permute.xlu0 %164
    %vm166 = vcmp.lt.s32.totalorder %v65, 113
    %v167 = vsel %vm166, %v163, %v165
    %v168 = vsel %vm166, %v165, %v163
    %v170 = vlaneseq
    %v171 = vshrl.u32 %v170, 7
    %v172 = vsub.s32 0, %v171
    %v173 = vrot.slane %v53, %v172
    %v174 = vlaneseq
    %v175 = vshrl.u32 %v174, 7
    %v176 = vsub.s32 1, %v175
    %v177 = vrot.slane %v53, %v176
    %v180 = vmul.f32 %v167, %v173
    %v181 = vmul.f32 %v168, %v177
    %182 = vrot.lane.b32.xlu0 %v56, 112
    %v183 = vpop.permute.xlu0 %182
    %184 = vrot.lane.b32.xlu0 %v58, 112
    %v185 = vpop.permute.xlu0 %184
    %vm186 = vcmp.lt.s32.totalorder %v65, 112
    %v187 = vsel %vm186, %v183, %v185
    %v188 = vsel %vm186, %v185, %v183
    %v190 = vlaneseq
    %v191 = vshrl.u32 %v190, 7
    %v192 = vsub.s32 0, %v191
    %v193 = vrot.slane %v54, %v192
    %v194 = vlaneseq
    %v195 = vshrl.u32 %v194, 7
    %v196 = vsub.s32 1, %v195
    %v197 = vrot.slane %v54, %v196
    %v200 = vmul.f32 %v187, %v193
    %v201 = vmul.f32 %v188, %v197
    %202 = vrot.lane.b32.xlu0 %v56, 111
    %v203 = vpop.permute.xlu0 %202
    %204 = vrot.lane.b32.xlu0 %v58, 111
    %v205 = vpop.permute.xlu0 %204
    %vm206 = vcmp.lt.s32.totalorder %v65, 111
    %v207 = vsel %vm206, %v203, %v205
    %v208 = vsel %vm206, %v205, %v203
    %v210 = vlaneseq
    %v211 = vshrl.u32 %v210, 7
    %v212 = vsub.s32 0, %v211
    %v213 = vrot.slane %v55, %v212
    %v214 = vlaneseq
    %v215 = vshrl.u32 %v214, 7
    %v216 = vsub.s32 1, %v215
    %v217 = vrot.slane %v55, %v216
    %v220 = vmul.f32 %v207, %v213
    %v221 = vmul.f32 %v208, %v217
    %v224 = vrot.slane %v100, 4
    %v225 = vrot.slane %v101, 4
    %v230 = vrot.slane %v140, 4
    %v231 = vrot.slane %v141, 4
    %v236 = vrot.slane %v160, 4
    %v237 = vrot.slane %v161, 4
    %v242 = vrot.slane %v200, 4
    %v243 = vrot.slane %v201, 4
    %vm246 = vcmask 1043456
    %v247 = vsel %vm246, %v80, %v224
    %v248 = vsel %vm246, %v81, %v225
    %v249 = vsel %vm246, %v120, %v230
    %v250 = vsel %vm246, %v121, %v231
    %v251 = vsel %vm246, %v56, %v236
    %v252 = vsel %vm246, %v58, %v237
    %v253 = vsel %vm246, %v180, %v242
    %v254 = vsel %vm246, %v181, %v243
    %vm255 = vcmask 293888
    %v257 = vsel %vm255, %v47, 0
    %v260 = vsel %vm246, %v220, 0
    %v263 = vsel %vm246, %v221, 0
    %265 = vmatprep.subr.mxu0 %v248
    %266 = vmatpush1.msra.mxu0 %v247
    %267 = vmatprep.subr.mxu0 %v250
    %268 = vmatpush1.msra.mxu0 %v249
    %269 = vmatprep.subr.mxu0 %v252
    %270 = vmatpush1.msra.mxu0 %v251
    %271 = vmatprep.subr.mxu0 %v254
    %272 = vmatpush1.msra.mxu0 %v253
    %273 = vmatprep.subr.mxu0 %v263
    %274 = vmatpush1.msra.mxu0 %v260
    %275 = vmatprep.subr.mxu0 0.0
    %276 = vmatpush1.msra.mxu0 0.0
    %277 = vmatprep.subr.mxu0 0.0
    %278 = vmatpush1.msra.mxu0 0.0
    %279 = vmatprep.subr.mxu0 0.0
    %280 = vmatpush1.msra.mxu0 0.0
    %281 = vmatprep.subr.mxu0 0.0
    %282 = vmatpush1.msra.mxu0 0.0
    %283 = vmatprep.subr.mxu0 0.0
    %284 = vmatpush1.msra.mxu0 0.0
    %285 = vmatprep.subr.mxu0 0.0
    %286 = vmatpush1.msra.mxu0 0.0
    %287 = vmatprep.subr.mxu0 0.0
    %288 = vmatpush1.msra.mxu0 0.0
    %289 = vmatprep.subr.mxu0 0.0
    %290 = vmatpush1.msra.mxu0 0.0
    %291 = vmatprep.subr.mxu0 0.0
    %292 = vmatpush1.msra.mxu0 0.0
    %293 = vmatprep.subr.mxu0 0.0
    %294 = vmatpush1.msra.mxu0 0.0
    %295 = vmatprep.subr.mxu0 0.0
    %296 = vmatpush1.msra.mxu0 0.0
    %297 = vmatprep.subr.mxu0 0.0
    %298 = vmatpush1.msra.mxu0 0.0
    %299 = vmatprep.subr.mxu0 0.0
    %300 = vmatpush1.msra.mxu0 0.0
    %301 = vmatprep.subr.mxu0 0.0
    %302 = vmatpush1.msra.mxu0 0.0
    %303 = vmatprep.subr.mxu0 0.0
    %304 = vmatpush1.msra.mxu0 0.0
    %305 = vmatprep.subr.mxu0 0.0
    %306 = vmatpush1.msra.mxu0 0.0
    %307 = vmatprep.subr.mxu0 0.0
    %308 = vmatpush1.msra.mxu0 0.0
    %309 = vmatprep.subr.mxu0 0.0
    %310 = vmatpush1.msra.mxu0 0.0
    %311 = vmatprep.subr.mxu0 0.0
    %312 = vmatpush1.msra.mxu0 0.0
    %313 = vmatprep.subr.mxu0 0.0
    %314 = vmatpush1.msra.mxu0 0.0
    %315 = vmatprep.subr.mxu0 0.0
    %316 = vmatpush1.msra.mxu0 0.0
    %317 = vmatprep.subr.mxu0 0.0
    %318 = vmatpush1.msra.mxu0 0.0
    %319 = vmatprep.subr.mxu0 0.0
    %320 = vmatpush1.msra.mxu0 0.0
    %321 = vmatprep.subr.mxu0 0.0
    %322 = vmatpush1.msra.mxu0 0.0
    %323 = vmatprep.subr.mxu0 0.0
    %324 = vmatpush1.msra.mxu0 0.0
    %325 = vmatprep.subr.mxu0 0.0
    %326 = vmatpush1.msra.mxu0 0.0
    %327 = vmatprep.subr.mxu0 0.0
    %328 = vmatpush1.msra.mxu0 0.0
    %329 = vmatprep.mubr.f32.mxu0 0.0
    %330 = vmatmul.mubr.f32.gmra.mrb[0].mxu0 %v257
    %v331 = vpop.f32.mrb[0].mxu0
    %v332 = vadd.f32 0.0, %v331
    %v333 = vpop.f32.mrb[0].mxu0
    %v334 = vadd.f32 0.0, %v333
    %335 = vdwg.mxu0
    %s336 = scalar_lea.vmem [#allocation2], 8
    %v337 = vld [vmem:[%s336] sm:$0xff]
    %v339 = vcombine.high %v337, %v337
    %341 = vrot.lane.b32.xlu0 %v337, 17
    %v342 = vpop.permute.xlu0 %341
    %343 = vrot.lane.b32.xlu0 %v339, 17
    %v344 = vpop.permute.xlu0 %343
    %v345 = vsel %vm66, %v342, %v344
    %v346 = vsel %vm66, %v344, %v342
    %v347 = vmul.f32 %v346, %v73
    %v348 = vmul.f32 %v345, %v77
    %349 = vrot.lane.b32.xlu0 %v337, 16
    %v350 = vpop.permute.xlu0 %349
    %351 = vrot.lane.b32.xlu0 %v339, 16
    %v352 = vpop.permute.xlu0 %351
    %v353 = vsel %vm86, %v350, %v352
    %v354 = vsel %vm86, %v352, %v350
    %v355 = vmul.f32 %v354, %v93
    %v356 = vmul.f32 %v353, %v97
    %357 = vrot.lane.b32.xlu0 %v337, 15
    %v358 = vpop.permute.xlu0 %357
    %359 = vrot.lane.b32.xlu0 %v339, 15
    %v360 = vpop.permute.xlu0 %359
    %v361 = vsel %vm106, %v358, %v360
    %v362 = vsel %vm106, %v360, %v358
    %v363 = vmul.f32 %v362, %v113
    %v364 = vmul.f32 %v361, %v117
    %365 = vrot.lane.b32.xlu0 %v337, 1
    %v366 = vpop.permute.xlu0 %365
    %367 = vrot.lane.b32.xlu0 %v339, 1
    %v368 = vpop.permute.xlu0 %367
    %v369 = vsel %vm126, %v366, %v368
    %v370 = vsel %vm126, %v368, %v366
    %v371 = vmul.f32 %v370, %v133
    %v372 = vmul.f32 %v369, %v137
    %373 = vrot.lane.b32.xlu0 %v337, 127
    %v374 = vpop.permute.xlu0 %373
    %375 = vrot.lane.b32.xlu0 %v339, 127
    %v376 = vpop.permute.xlu0 %375
    %v377 = vsel %vm146, %v374, %v376
    %v378 = vsel %vm146, %v376, %v374
    %v379 = vmul.f32 %v377, %v153
    %v380 = vmul.f32 %v378, %v157
    %381 = vrot.lane.b32.xlu0 %v337, 113
    %v382 = vpop.permute.xlu0 %381
    %383 = vrot.lane.b32.xlu0 %v339, 113
    %v384 = vpop.permute.xlu0 %383
    %v385 = vsel %vm166, %v382, %v384
    %v386 = vsel %vm166, %v384, %v382
    %v387 = vmul.f32 %v385, %v173
    %v388 = vmul.f32 %v386, %v177
    %389 = vrot.lane.b32.xlu0 %v337, 112
    %v390 = vpop.permute.xlu0 %389
    %391 = vrot.lane.b32.xlu0 %v339, 112
    %v392 = vpop.permute.xlu0 %391
    %v393 = vsel %vm186, %v390, %v392
    %v394 = vsel %vm186, %v392, %v390
    %v395 = vmul.f32 %v393, %v193
    %v396 = vmul.f32 %v394, %v197
    %397 = vrot.lane.b32.xlu0 %v337, 111
    %v398 = vpop.permute.xlu0 %397
    %399 = vrot.lane.b32.xlu0 %v339, 111
    %v400 = vpop.permute.xlu0 %399
    %v401 = vsel %vm206, %v398, %v400
    %v402 = vsel %vm206, %v400, %v398
    %v403 = vmul.f32 %v401, %v213
    %v404 = vmul.f32 %v402, %v217
    %v407 = vrot.slane %v355, 4
    %v408 = vrot.slane %v356, 4
    %v413 = vrot.slane %v371, 4
    %v414 = vrot.slane %v372, 4
    %v419 = vrot.slane %v379, 4
    %v420 = vrot.slane %v380, 4
    %v425 = vrot.slane %v395, 4
    %v426 = vrot.slane %v396, 4
    %v429 = vsel %vm246, %v347, %v407
    %v430 = vsel %vm246, %v348, %v408
    %v431 = vsel %vm246, %v363, %v413
    %v432 = vsel %vm246, %v364, %v414
    %v433 = vsel %vm246, %v337, %v419
    %v434 = vsel %vm246, %v339, %v420
    %v435 = vsel %vm246, %v387, %v425
    %v436 = vsel %vm246, %v388, %v426
    %v438 = vsel %vm246, %v403, 0
    %v441 = vsel %vm246, %v404, 0
    %443 = vmatprep.subr.mxu0 %v430
    %444 = vmatpush1.msra.mxu0 %v429
    %445 = vmatprep.subr.mxu0 %v432
    %446 = vmatpush1.msra.mxu0 %v431
    %447 = vmatprep.subr.mxu0 %v434
    %448 = vmatpush1.msra.mxu0 %v433
    %449 = vmatprep.subr.mxu0 %v436
    %450 = vmatpush1.msra.mxu0 %v435
    %451 = vmatprep.subr.mxu0 %v441
    %452 = vmatpush1.msra.mxu0 %v438
    %453 = vmatprep.subr.mxu0 0.0
    %454 = vmatpush1.msra.mxu0 0.0
    %455 = vmatprep.subr.mxu0 0.0
    %456 = vmatpush1.msra.mxu0 0.0
    %457 = vmatprep.subr.mxu0 0.0
    %458 = vmatpush1.msra.mxu0 0.0
    %459 = vmatprep.subr.mxu0 0.0
    %460 = vmatpush1.msra.mxu0 0.0
    %461 = vmatprep.subr.mxu0 0.0
    %462 = vmatpush1.msra.mxu0 0.0
    %463 = vmatprep.subr.mxu0 0.0
    %464 = vmatpush1.msra.mxu0 0.0
    %465 = vmatprep.subr.mxu0 0.0
    %466 = vmatpush1.msra.mxu0 0.0
    %467 = vmatprep.subr.mxu0 0.0
    %468 = vmatpush1.msra.mxu0 0.0
    %469 = vmatprep.subr.mxu0 0.0
    %470 = vmatpush1.msra.mxu0 0.0
    %471 = vmatprep.subr.mxu0 0.0
    %472 = vmatpush1.msra.mxu0 0.0
    %473 = vmatprep.subr.mxu0 0.0
    %474 = vmatpush1.msra.mxu0 0.0
    %475 = vmatprep.subr.mxu0 0.0
    %476 = vmatpush1.msra.mxu0 0.0
    %477 = vmatprep.subr.mxu0 0.0
    %478 = vmatpush1.msra.mxu0 0.0
    %479 = vmatprep.subr.mxu0 0.0
    %480 = vmatpush1.msra.mxu0 0.0
    %481 = vmatprep.subr.mxu0 0.0
    %482 = vmatpush1.msra.mxu0 0.0
    %483 = vmatprep.subr.mxu0 0.0
    %484 = vmatpush1.msra.mxu0 0.0
    %485 = vmatprep.subr.mxu0 0.0
    %486 = vmatpush1.msra.mxu0 0.0
    %487 = vmatprep.subr.mxu0 0.0
    %488 = vmatpush1.msra.mxu0 0.0
    %489 = vmatprep.subr.mxu0 0.0
    %490 = vmatpush1.msra.mxu0 0.0
    %491 = vmatprep.subr.mxu0 0.0
    %492 = vmatpush1.msra.mxu0 0.0
    %493 = vmatprep.subr.mxu0 0.0
    %494 = vmatpush1.msra.mxu0 0.0
    %495 = vmatprep.subr.mxu0 0.0
    %496 = vmatpush1.msra.mxu0 0.0
    %497 = vmatprep.subr.mxu0 0.0
    %498 = vmatpush1.msra.mxu0 0.0
    %499 = vmatprep.subr.mxu0 0.0
    %500 = vmatpush1.msra.mxu0 0.0
    %501 = vmatprep.subr.mxu0 0.0
    %502 = vmatpush1.msra.mxu0 0.0
    %503 = vmatprep.subr.mxu0 0.0
    %504 = vmatpush1.msra.mxu0 0.0
    %505 = vmatprep.subr.mxu0 0.0
    %506 = vmatpush1.msra.mxu0 0.0
    %507 = vmatprep.mubr.f32.mxu0 0.0
    %508 = vmatmul.mubr.f32.gmra.mrb[0].mxu0 %v257
    %v509 = vpop.f32.mrb[0].mxu0
    %v510 = vadd.f32 0.0, %v509
    %v511 = vpop.f32.mrb[0].mxu0
    %v512 = vadd.f32 0.0, %v511
    %513 = vdwg.mxu0
    %v514 = vmul.f32 %v332, %v332
    %v515 = vmul.f32 %v334, %v334
    %v516 = vadd.f32 %v332, %v510
    %v517 = vadd.f32 %v334, %v512
    %v518 = vmul.f32 %v510, %v510
    %v519 = vmul.f32 %v512, %v512
    %v520 = vadd.f32 %v514, %v518
    %v521 = vadd.f32 %v515, %v519
    %v522 = vadd.f32 %v516, %v517
    %523 = vadd.xlane.f32.xlu0 %v522
    %v524 = vpop.xlane.xlu0 %523
    %v525 = vmul.f32 %v524, 0.001953125
    %v526 = vadd.f32 %v520, %v521
    %527 = vadd.xlane.f32.xlu0 %v526
    %v528 = vpop.xlane.xlu0 %527
    %v529 = vmul.f32 %v528, 0.001953125
    %v530 = vmul.f32 %v525, %v525
    %v531 = vsub.f32 %v529, %v530
    %v532 = vadd.f32 %v531, 1e-05
    %v533 = vrsqrt.pop %v532
    %v534 = vld [vmem:[%s3] sm:$0xff]
    %v535 = vmul.f32 %v534, %v533
    %v536 = vld [vmem:[%s4] sm:$0xff]
    %v537 = vmul.f32 %v525, %v535
    %v538 = vsub.f32 %v536, %v537
    %540 = vset.pattern.permute.xlu0 0
    %541 = vperm.xlu0 %540, %v535
    %v542 = vpop.permute.xlu0 %541
    %v544 = vmul.f32 %v332, %v542
    %v545 = vmul.f32 %v334, %v542
    %547 = vset.pattern.permute.xlu0 0
    %548 = vperm.xlu0 %547, %v538
    %v549 = vpop.permute.xlu0 %548
    %v551 = vadd.f32 %v544, %v549
    %v552 = vadd.f32 %v545, %v549
    %vm553 = vcmp.gt.f32.partialorder %v551, 0.0
    %vm554 = vcmp.gt.f32.partialorder %v552, 0.0
    %v555 = vmul.f32 %v551, 0.02
    %v556 = vmul.f32 %v552, 0.02
    %v557 = vsel %vm553, %v551, %v555
    %v558 = vsel %vm554, %v552, %v556
    %559 = vst [vmem:[#allocation7] sm:$0xff] %v557
    %560 = vst [vmem:[#allocation7 + $0x8] sm:$0xff] %v558
    %v561 = vmul.f32 %v510, %v542
    %v562 = vmul.f32 %v512, %v542
    %v563 = vadd.f32 %v561, %v549
    %v564 = vadd.f32 %v562, %v549
    %vm565 = vcmp.gt.f32.partialorder %v563, 0.0
    %vm566 = vcmp.gt.f32.partialorder %v564, 0.0
    %v567 = vmul.f32 %v563, 0.02
    %v568 = vmul.f32 %v564, 0.02
    %v569 = vsel %vm565, %v563, %v567
    %v570 = vsel %vm566, %v564, %v568
    %s571 = scalar_lea.vmem [#allocation7], 16
    %572 = vst [vmem:[%s571] sm:$0xff] %v569
    %573 = vst [vmem:[%s571 + $0x8] sm:$0xff] %v570
    // Predicated region
    $region30: #{tpu_custom_call.1} parent=1 // pred_check
      _
    $region31: #{tpu_custom_call.1} parent=1 // pred_check_branch
      %575 = sbr.rel (0) target = $region33
    $region32: #{tpu_custom_call.1} parent=1 // pred_region
      %s577 = ssub.s32 512, 512
      %578 = vsyncadd [#allocation4], %s577
      %s579 = sshll.u32 [#allocation7], 4
      %s580 = int_to_ptr.vmem [resolvable:$true] %s579
      %585 = dma.vmem_to_hbm [thread:$0]  %s580, 512, %s5, [#allocation4], 256, 256, 16
    $region33: #{tpu_custom_call.1} parent=1 // pred_fallthru
      _
    // Predicated region
    $region34: #{tpu_custom_call.1} parent=1 // pred_check
      _
    $region35: #{tpu_custom_call.1} parent=1 // pred_check_branch
      %587 = sbr.rel (0) target = $region37
    $region36: #{tpu_custom_call.1} parent=1 // pred_region
      %588 = dma.done [#allocation4], 512
    $region37: #{tpu_custom_call.1} parent=1 // pred_fallthru
      _
    %589 = vsyncpa [#allocation3], 1
    %590 = vsyncpa [#allocation6], 1
    %591 = vsyncpa [#allocation4], 1

</llo_original>
